<compile_context>
chip_gen: v7x
topology: tpu7x:2x2x1
jax: 0.10.0
libtpu: 0.0.40
codegen_flags: <defaults>
</compile_context>

<pallas_src>
import jax
import jax.numpy as jnp
from jax.experimental import pallas as pl
from jax.experimental.pallas import tpu as pltpu

LANES = 128          # lane width of a vreg
SUB_ROWS = 512       # rows per in-kernel accumulation slab (256 KiB f32 temp)
_VMEM_FALLBACK = 64 * 1024 * 1024   # conservative (v7x per-TC) if get_tpu_info fails
_VMEM_HEADROOM = 6 * 1024 * 1024


def _round_down(x, m):
    return (x // m) * m


# --------------------------- hardware queries ------------------------------ #

def _tpu_info():
    try:
        return pltpu.get_tpu_info()
    except Exception:
        return None


def _vmem_limit_bytes():
    info = _tpu_info()
    cap = _VMEM_FALLBACK
    if info is not None:
        cap = int(getattr(info, "vmem_capacity_bytes", _VMEM_FALLBACK) or _VMEM_FALLBACK)
    # ~3/4 of physical VMEM, capped at 96 MiB (v7x: 48 MiB; v5e/v6e: 96 MiB).
    return min(cap * 3 // 4, 96 * 1024 * 1024)


def _num_tensorcores():
    info = _tpu_info()
    if info is not None:
        for name in ("num_tensorcores", "tensorcore_count", "num_cores", "core_count"):
            v = getattr(info, name, None)
            if isinstance(v, int) and v > 0:
                return v
    return 1   # safe default: v5e/v6e have a single TC per chip


def _pick_tile_rows(rows, stream_itemsizes, base_itemsize, vmem_limit):
    """~4 MiB per streamed block; shrink until double-buffered streams + f32
    temps fit the scoped-VMEM budget.  Always rows itself (full extent) or a
    multiple of SUB_ROWS."""
    target = max(SUB_ROWS, _round_down((4 << 20) // (LANES * base_itemsize), SUB_ROWS))
    if rows <= target:
        return rows                                   # single full-extent block
    per_row = LANES * (2 * sum(stream_itemsizes) + 3 * 4)   # 2x buffers + ~3 f32 temps
    budget = max(4 << 20, vmem_limit - _VMEM_HEADROOM)
    tr = target
    while tr > SUB_ROWS and tr * per_row > budget:
        tr = max(SUB_ROWS, _round_down(tr // 2, SUB_ROWS))
    return tr


# ------------------------------ kernels ------------------------------------ #

def _make_none_kernel(loss_weight, weighted, compute_dtype):
    """Element-wise |p-t| (*w) * loss_weight, computed in the promoted dtype."""
    lw = float(loss_weight)

    def kernel(*refs):
        if weighted:
            p_ref, t_ref, w_ref, o_ref = refs
        else:
            p_ref, t_ref, o_ref = refs
        d = jnp.abs(p_ref[...].astype(compute_dtype) - t_ref[...].astype(compute_dtype))
        if weighted:
            d = d * w_ref[...].astype(compute_dtype)
        if lw != 1.0:
            d = d * lw                      # weakly-typed scalar: keeps compute dtype
        o_ref[...] = d.astype(o_ref.dtype)

    return kernel


def _make_sum_kernel(*, rows, tile_rows, sub_rows, steps, weighted, masked):
    """Accumulates sum(|p-t|(*w)) (and sum(w)) into a (1|2, 128) f32 block that
    stays resident across the 'arbitrary' grid axis.  Work is done in
    sub_rows-row slabs so the f32 temporaries stay small even for 4 MiB tiles.
    `masked` statically enables row masking for the (single) partial last block."""
    n_sub = tile_rows // sub_rows
    assert n_sub * sub_rows == tile_rows

    def kernel(*refs):
        if weighted:
            p_ref, t_ref, w_ref, o_ref = refs
        else:
            p_ref, t_ref, o_ref = refs
            w_ref = None

        i = pl.program_id(1)

        @pl.when(i == 0)
        def _():
            o_ref[...] = jnp.zeros(o_ref.shape, o_ref.dtype)

        blk = pl.program_id(0) * steps + i
        if masked:
            valid_blk = jnp.clip(rows - blk * tile_rows, 0, tile_rows).astype(jnp.int32)

        def slab_sums(r0):
            sl = pl.ds(r0, sub_rows)
            p = p_ref[sl, :].astype(jnp.float32)
            t = t_ref[sl, :].astype(jnp.float32)
            d = jnp.abs(p - t)
            w = None
            if weighted:
                w = w_ref[sl, :].astype(jnp.float32)
                d = d * w
            if masked:
                rid = jax.lax.broadcasted_iota(jnp.int32, (sub_rows, LANES), 0)
                keep = rid < (valid_blk - r0)
                d = jnp.where(keep, d, 0.0)
                if weighted:
                    w = jnp.where(keep, w, 0.0)
            outs = [jnp.sum(d, axis=0, keepdims=True)]
            if weighted:
                outs.append(jnp.sum(w, axis=0, keepdims=True))
            return tuple(outs)

        if n_sub == 1:
            parts = slab_sums(0)
        else:
            def body(j, acc):
                r0 = pl.multiple_of(j * sub_rows, sub_rows)
                s = slab_sums(r0)
                return tuple(a + b for a, b in zip(acc, s))

            init = tuple(jnp.zeros((1, LANES), jnp.float32)
                         for _ in range(2 if weighted else 1))
            parts = jax.lax.fori_loop(0, n_sub, body, init, unroll=min(n_sub, 8))

        o_ref[0:1, :] += parts[0]
        if weighted:
            o_ref[1:2, :] += parts[1]

    return kernel


# ------------------------------ wrapper ------------------------------------ #

def l1_loss_pallas(pred, target, weight=None, loss_weight=1.0, reduction="mean"):
    if reduction not in ("none", "mean", "sum"):
        raise ValueError(f"Unsupported reduction mode: {reduction}")
    assert pred.shape == target.shape

    orig_shape = pred.shape
    n_elems = int(pred.size)
    itemsize = jnp.dtype(pred.dtype).itemsize

    if weight is not None and weight.shape != pred.shape:
        # basicsr allows a C==1 weight; broadcasting makes both the weighted sum
        # and the 'mean' divisor (C * sum(w)) exact.
        # TODO(synk): stream the un-broadcast (N,1,H,W) weight via a
        # channel-dropping index_map to avoid materializing the C-x broadcast.
        weight = jnp.broadcast_to(weight, pred.shape)

    weighted = weight is not None
    if weighted:
        out_dtype = jnp.result_type(pred.dtype, target.dtype, weight.dtype)
    else:
        out_dtype = jnp.result_type(pred.dtype, target.dtype)

    vmem_limit = _vmem_limit_bytes()
    rows_full = n_elems // LANES
    lane_tail = n_elems - rows_full * LANES

    # ------------------------------ 'none' --------------------------------- #
    if reduction == "none":
        pad = (LANES - lane_tail) % LANES
        rows = rows_full + (1 if lane_tail else 0)

        def to2d(x):
            flat = jnp.ravel(x)
            if pad:
                # TODO(synk): rare <128-tail fallback still pads (one extra copy);
                # aligned shapes (n % 128 == 0) take the zero-copy reshape path.
                flat = jnp.pad(flat, (0, pad))
            return flat.reshape(rows, LANES)

        args = [to2d(pred), to2d(target)] + ([to2d(weight)] if weighted else [])
        stream_is = [a.dtype.itemsize for a in args] + [jnp.dtype(out_dtype).itemsize]
        tile_rows = _pick_tile_rows(rows, stream_is, itemsize, vmem_limit)
        spec = pl.BlockSpec((tile_rows, LANES), lambda i: (i, 0))
        kernel = _make_none_kernel(loss_weight, weighted, out_dtype)

        bytes_acc = sum(int(a.size) * a.dtype.itemsize for a in args)
        bytes_acc += rows * LANES * jnp.dtype(out_dtype).itemsize
        out2d = pl.pallas_call(
            kernel,
            out_shape=jax.ShapeDtypeStruct((rows, LANES), out_dtype),
            grid=(pl.cdiv(rows, tile_rows),),
            in_specs=[spec] * len(args),
            out_specs=spec,
            compiler_params=pltpu.CompilerParams(
                dimension_semantics=("parallel",),
                vmem_limit_bytes=vmem_limit),
            cost_estimate=pl.CostEstimate(
                flops=3 * n_elems, transcendentals=0, bytes_accessed=bytes_acc),
        )(*args)

        if pad:
            out2d = out2d.reshape(-1)[:n_elems]
        return out2d.reshape(orig_shape)

    # --------------------------- 'sum' / 'mean' ----------------------------- #
    flatp, flatt = jnp.ravel(pred), jnp.ravel(target)
    flatw = jnp.ravel(weight) if weighted else None

    l1_sum = jnp.zeros((), jnp.float32)
    w_sum = jnp.zeros((), jnp.float32) if weighted else None

    if lane_tail:
        # <128-element tail: tiny XLA epilogue; keeps the bulk kernel copy-free
        # for all shapes where n_elems % 128 == 0.
        pt = flatp[rows_full * LANES:].astype(jnp.float32)
        tt = flatt[rows_full * LANES:].astype(jnp.float32)
        dt = jnp.abs(pt - tt)
        if weighted:
            wt = flatw[rows_full * LANES:].astype(jnp.float32)
            dt = dt * wt
            w_sum = w_sum + jnp.sum(wt)
        l1_sum = l1_sum + jnp.sum(dt)

    if rows_full > 0:
        rows = rows_full

        def to2d(flat):
            if lane_tail:
                # TODO(synk): this prefix slice copies the bulk once for ragged
                # (n % 128 != 0) element counts; unavoidable without a 1-D layout.
                flat = flat[:rows * LANES]
            return flat.reshape(rows, LANES)

        args = [to2d(flatp), to2d(flatt)] + ([to2d(flatw)] if weighted else [])
        stream_is = [a.dtype.itemsize for a in args]
        tile_rows = _pick_tile_rows(rows, stream_is, itemsize, vmem_limit)
        sub_rows = SUB_ROWS if tile_rows % SUB_ROWS == 0 else tile_rows
        total_blocks = pl.cdiv(rows, tile_rows)
        masked = (rows % tile_rows) != 0

        ncores = _num_tensorcores()
        if ncores > 1 and total_blocks % ncores == 0 and total_blocks >= 2 * ncores:
            nc = ncores          # second TC shares the reduction (v7x)
        else:
            nc = 1
        steps = total_blocks // nc
        acc_rows = 2 if weighted else 1

        kernel = _make_sum_kernel(rows=rows, tile_rows=tile_rows, sub_rows=sub_rows,
                                  steps=steps, weighted=weighted, masked=masked)
        in_spec = pl.BlockSpec((tile_rows, LANES), lambda c, i, s=steps: (c * s + i, 0))
        out_spec = pl.BlockSpec((None, acc_rows, LANES), lambda c, i: (c, 0, 0))

        bytes_acc = sum(int(a.size) * a.dtype.itemsize for a in args)
        partials = pl.pallas_call(
            kernel,
            out_shape=jax.ShapeDtypeStruct((nc, acc_rows, LANES), jnp.float32),
            grid=(nc, steps),
            in_specs=[in_spec] * len(args),
            out_specs=out_spec,
            compiler_params=pltpu.CompilerParams(
                dimension_semantics=("parallel", "arbitrary"),
                vmem_limit_bytes=vmem_limit),
            cost_estimate=pl.CostEstimate(
                flops=4 * n_elems, transcendentals=0, bytes_accessed=bytes_acc),
        )(*args)

        l1_sum = l1_sum + jnp.sum(partials[:, 0, :])
        if weighted:
            w_sum = w_sum + jnp.sum(partials[:, 1, :])

    if reduction == "sum":
        result = l1_sum
    else:  # mean
        result = l1_sum / (w_sum if weighted else jnp.float32(n_elems))
    return (jnp.float32(loss_weight) * result).astype(out_dtype)


# -------------------------------- demo -------------------------------------- #

if __name__ == "__main__":
    # Module has no learned parameters; loss_weight is a deterministic scalar.
    key = jax.random.PRNGKey(0)
    k1, k2, k3 = jax.random.split(key, 3)
    pred = jax.random.normal(k1, (2, 4, 16, 16), dtype=jnp.float32)    # NCHW
    target = jax.random.normal(k2, (2, 4, 16, 16), dtype=jnp.float32)  # NCHW
    weight = jax.random.uniform(k3, (2, 4, 16, 16), dtype=jnp.float32)

    # default path: weight=None, reduction='mean'
    out = jax.block_until_ready(
        l1_loss_pallas(pred, target, weight=None, loss_weight=1.0, reduction="mean"))
    ref = jnp.mean(jnp.abs(pred - target))
    assert jnp.allclose(out, ref, rtol=1e-5, atol=1e-6), (out, ref)

    # weighted 'mean' (basicsr: sum(|p-t|*w) / sum(w))
    out_w = jax.block_until_ready(
        l1_loss_pallas(pred, target, weight=weight, reduction="mean"))
    ref_w = jnp.sum(jnp.abs(pred - target) * weight) / jnp.sum(weight)
    assert jnp.allclose(out_w, ref_w, rtol=1e-5, atol=1e-6), (out_w, ref_w)

    # weighted 'mean' with a C==1 weight (basicsr: divisor = C * sum(w))
    w1 = jax.random.uniform(k3, (2, 1, 16, 16), dtype=jnp.float32)
    out_w1 = jax.block_until_ready(
        l1_loss_pallas(pred, target, weight=w1, reduction="mean"))
    wb = jnp.broadcast_to(w1, pred.shape)
    ref_w1 = jnp.sum(jnp.abs(pred - target) * wb) / jnp.sum(wb)
    assert jnp.allclose(out_w1, ref_w1, rtol=1e-5, atol=1e-6), (out_w1, ref_w1)

    # 'none' path with loss_weight folded into the kernel
    out_n = jax.block_until_ready(
        l1_loss_pallas(pred, target, loss_weight=2.0, reduction="none"))
    assert out_n.shape == pred.shape
    assert jnp.allclose(out_n, 2.0 * jnp.abs(pred - target), rtol=1e-6, atol=1e-6)

    # weighted 'sum'
    out_s = jax.block_until_ready(
        l1_loss_pallas(pred, target, weight=weight, reduction="sum"))
    assert jnp.allclose(out_s, jnp.sum(jnp.abs(pred - target) * weight),
                        rtol=1e-5, atol=1e-4), out_s

    # ragged tail (not a multiple of 128) exercises the tail-epilogue / pad paths
    pr = jax.random.normal(k1, (2, 3, 7, 5), dtype=jnp.float32)
    tr = jax.random.normal(k2, (2, 3, 7, 5), dtype=jnp.float32)
    out_r = jax.block_until_ready(l1_loss_pallas(pr, tr, reduction="mean"))
    assert jnp.allclose(out_r, jnp.mean(jnp.abs(pr - tr)), rtol=1e-5, atol=1e-6)
    out_rn = jax.block_until_ready(l1_loss_pallas(pr, tr, reduction="none"))
    assert out_rn.shape == pr.shape
    assert jnp.allclose(out_rn, jnp.abs(pr - tr), rtol=1e-6, atol=1e-6)

    print("KERNEL_OK")
</pallas_src>

<mosaic_0001>
module attributes {stable_mosaic.version = 11 : i64} {
  func.func @kernel(%arg0: i32, %arg1: i32, %arg2: memref<16x128xf32, #tpu.memory_space<vmem>>, %arg3: memref<16x128xf32, #tpu.memory_space<vmem>>, %arg4: memref<1x1x128xf32, #tpu.memory_space<vmem>>) attributes {dimension_semantics = [#tpu.dimension_semantics<parallel>, #tpu.dimension_semantics<arbitrary>], iteration_bounds = array<i64: 1, 1>, scalar_prefetch = 0 : i64, scratch_operands = 0 : i64, tpu.core_type = #tpu.core_type<tc>, window_params = [{transform_indices = @transform_0, window_bounds = array<i64: 16, 128>}, {transform_indices = @transform_1, window_bounds = array<i64: 16, 128>}, {transform_indices = @transform_2, window_bounds = array<i64: 1, 1, 128>}]} {
    %c0_i32 = arith.constant 0 : i32
    %0 = arith.cmpi eq, %arg1, %c0_i32 : i32
    %1 = arith.extui %0 : i1 to i32
    %c0_i32_0 = arith.constant 0 : i32
    %2 = arith.cmpi ne, %1, %c0_i32_0 : i32
    scf.if %2 {
      %cst_10 = arith.constant 0.000000e+00 : f32
      %15 = vector.broadcast %cst_10 : f32 to vector<1x128xf32>
      %c0_11 = arith.constant 0 : index
      %c0_12 = arith.constant 0 : index
      %c0_13 = arith.constant 0 : index
      %16 = vector.load %arg4[%c0_11, %c0_12, %c0_13] : memref<1x1x128xf32, #tpu.memory_space<vmem>>, vector<1x1x128xf32>
      %17 = vector.shape_cast %16 : vector<1x1x128xf32> to vector<1x128xf32>
      %18 = vector.shape_cast %15 : vector<1x128xf32> to vector<1x1x128xf32>
      tpu.vector_store %arg4[%c0_11, %c0_12, %c0_13], %18 {strides = array<i32>} : memref<1x1x128xf32, #tpu.memory_space<vmem>>, vector<1x1x128xf32>,
    } else {
    }
    %c0 = arith.constant 0 : index
    %c0_1 = arith.constant 0 : index
    %3 = vector.load %arg2[%c0, %c0_1] : memref<16x128xf32, #tpu.memory_space<vmem>>, vector<16x128xf32>
    %c0_2 = arith.constant 0 : index
    %c0_3 = arith.constant 0 : index
    %4 = vector.load %arg3[%c0_2, %c0_3] : memref<16x128xf32, #tpu.memory_space<vmem>>, vector<16x128xf32>
    %5 = arith.subf %3, %4 : vector<16x128xf32>
    %6 = math.absf %5 : vector<16x128xf32>
    %cst = arith.constant dense<0.000000e+00> : vector<128xf32>
    %7 = vector.multi_reduction <add>, %6, %cst [0] : vector<16x128xf32> to vector<128xf32>
    %8 = vector.shape_cast %7 : vector<128xf32> to vector<1x128xf32>
    %c0_4 = arith.constant 0 : index
    %c0_5 = arith.constant 0 : index
    %c0_6 = arith.constant 0 : index
    %9 = vector.load %arg4[%c0_4, %c0_5, %c0_6] : memref<1x1x128xf32, #tpu.memory_space<vmem>>, vector<1x1x128xf32>
    %10 = vector.shape_cast %9 : vector<1x1x128xf32> to vector<1x128xf32>
    %11 = arith.addf %10, %8 : vector<1x128xf32>
    %c0_7 = arith.constant 0 : index
    %c0_8 = arith.constant 0 : index
    %c0_9 = arith.constant 0 : index
    %12 = vector.load %arg4[%c0_7, %c0_8, %c0_9] : memref<1x1x128xf32, #tpu.memory_space<vmem>>, vector<1x1x128xf32>
    %13 = vector.shape_cast %12 : vector<1x1x128xf32> to vector<1x128xf32>
    %14 = vector.shape_cast %11 : vector<1x128xf32> to vector<1x1x128xf32>
    tpu.vector_store %arg4[%c0_7, %c0_8, %c0_9], %14 {strides = array<i32>} : memref<1x1x128xf32, #tpu.memory_space<vmem>>, vector<1x1x128xf32>,
    return
  }
  func.func @transform_0(%arg0: i32, %arg1: i32) -> (i32, i32) {
    %c1_i32 = arith.constant 1 : i32
    %0 = arith.muli %arg0, %c1_i32 : i32
    %1 = arith.addi %0, %arg1 : i32
    %c0_i32 = arith.constant 0 : i32
    %c0_i32_0 = arith.constant 0 : i32
    return %1, %c0_i32 : i32, i32
  }
  func.func @transform_1(%arg0: i32, %arg1: i32) -> (i32, i32) {
    %c1_i32 = arith.constant 1 : i32
    %0 = arith.muli %arg0, %c1_i32 : i32
    %1 = arith.addi %0, %arg1 : i32
    %c0_i32 = arith.constant 0 : i32
    %c0_i32_0 = arith.constant 0 : i32
    return %1, %c0_i32 : i32, i32
  }
  func.func @transform_2(%arg0: i32, %arg1: i32) -> (i32, i32, i32) {
    %c0_i32 = arith.constant 0 : i32
    %c0_i32_0 = arith.constant 0 : i32
    %c0_i32_1 = arith.constant 0 : i32
    return %arg0, %c0_i32, %c0_i32_0 : i32, i32, i32
  }
}

</mosaic_0001>

<llo_original>
// kernel: tpu_custom_call.1
$region0: #{tpu_custom_call.1}
  #allocation0 [shape = 'u32[]', space=smem, size = 0x4, offset = 0x4, fixed_abs, tag = 'smem constant byte address 0x4 - core index']
  #allocation1 [shape = 'u32[144,128]{1,0:T(1,128)}', space=vmem, size = 0x12000, scoped, tag = 'internal scratch']
  %s0 = inlined_call_operand.hbm [shape: f32[16,128], index: 0, kind: input, shape index: {}]
  %s1 = inlined_call_operand.hbm [shape: f32[16,128], index: 1, kind: input, shape index: {}]
  %s2 = inlined_call_operand.hbm [shape: f32[1,1,128], index: 2, kind: output, shape index: {}]
  %s3 = sld [smem:[#allocation0]]
  $region30: #{tpu_custom_call.1} parent=0
    _
  %s5 = ssub.s32 1, %s3
  %s6 = scalar_select 0, %s5, %s3
  $region1: #{tpu_custom_call.1} parent=0
    #allocation2 [shape = 'u8[8192]{0}', space=vmem, size = 0x2000, scoped, tag = 'input window, operand 0, single buffered']
    #allocation3 [shape = 's32[1]{0}', space=sflag, size = 0x4, scoped, tag = 'scoped memory for tpu_custom_call.1']
    #allocation4 [shape = 's32[1]{0}', space=sflag, size = 0x4, scoped, tag = 'scoped memory for tpu_custom_call.1']
    #allocation5 [shape = 'u8[8192]{0}', space=vmem, size = 0x2000, scoped, tag = 'input window, operand 1, single buffered']
    #allocation6 [shape = 's32[1]{0}', space=sflag, size = 0x4, scoped, tag = 'scoped memory for tpu_custom_call.1']
    #allocation7 [shape = 'u8[512]{0}', space=vmem, size = 0x400, scoped, tag = 'output window, operand 0, single buffered']
    %7 = vsyncpa [#allocation3], 0
    %8 = vsyncpa [#allocation6], 0
    %9 = vsyncpa [#allocation4], 0
    // Predicated region
    $region2: #{tpu_custom_call.1} parent=1 // pred_check
      _
    $region3: #{tpu_custom_call.1} parent=1 // pred_check_branch
      %11 = sbr.rel (0) target = $region5
    $region4: #{tpu_custom_call.1} parent=1 // pred_region
      %s12 = sadd.s32 0, 0
      %s13 = smul.u32 2, %s12
      %s15 = ssub.s32 256, 256
      %16 = vsyncadd [#allocation3], %s15
      %s17 = smul.addr %s13, 128
      %s18 = scalar_lea.hbm %s0, %s17
      %s19 = sshll.u32 [#allocation2], 4
      %s20 = int_to_ptr.vmem [resolvable:$true] %s19
      %25 = dma.hbm_to_vmem [thread:$0]  %s18, 256, %s20, [#allocation3], 128, 128, 8
    $region5: #{tpu_custom_call.1} parent=1 // pred_fallthru
      _
    // Predicated region
    $region6: #{tpu_custom_call.1} parent=1 // pred_check
      _
    $region7: #{tpu_custom_call.1} parent=1 // pred_check_branch
      %27 = sbr.rel (0) target = $region9
    $region8: #{tpu_custom_call.1} parent=1 // pred_region
      %s28 = sadd.s32 0, 0
      %s29 = smul.u32 2, %s28
      %s31 = ssub.s32 256, 256
      %32 = vsyncadd [#allocation6], %s31
      %s33 = smul.addr %s29, 128
      %s34 = scalar_lea.hbm %s1, %s33
      %s35 = sshll.u32 [#allocation5], 4
      %s36 = int_to_ptr.vmem [resolvable:$true] %s35
      %41 = dma.hbm_to_vmem [thread:$0]  %s34, 256, %s36, [#allocation6], 128, 128, 8
    $region9: #{tpu_custom_call.1} parent=1 // pred_fallthru
      _
    // Predicated region
    $region10: #{tpu_custom_call.1} parent=1 // pred_check
      _
    $region11: #{tpu_custom_call.1} parent=1 // pred_check_branch
      %43 = sbr.rel (0) target = $region13
    $region12: #{tpu_custom_call.1} parent=1 // pred_region
      %44 = dma.done [#allocation3], 256
    $region13: #{tpu_custom_call.1} parent=1 // pred_fallthru
      _
    // Predicated region
    $region14: #{tpu_custom_call.1} parent=1 // pred_check
      _
    $region15: #{tpu_custom_call.1} parent=1 // pred_check_branch
      %46 = sbr.rel (0) target = $region17
    $region16: #{tpu_custom_call.1} parent=1 // pred_region
      %47 = dma.done [#allocation6], 256
    $region17: #{tpu_custom_call.1} parent=1 // pred_fallthru
      _
    %s48 = sadd.s32 0, 0
    %s49 = smul.u32 2, %s48
    %s50 = sadd.s32 0, 0
    %s51 = smul.u32 2, %s50
    %p52 = scmp.eq.s32.totalorder 0, 0
    // Predicated region
    $region18: #{tpu_custom_call.1} parent=1 // pred_check
      %p53 = pneg %p52
    $region19: #{tpu_custom_call.1} parent=1 // pred_check_branch
      %55 = sbr.rel (%p53) target = $region21
    $region20: #{tpu_custom_call.1} parent=1 // pred_region
      %56 = vst [vmem:[#allocation7] sm:$0x1] 0.0
    $region21: #{tpu_custom_call.1} parent=1 // pred_fallthru
      _
    %v57 = vld [vmem:[#allocation2] sm:$0xff]
    %v58 = vld [vmem:[#allocation2 + $0x8] sm:$0xff]
    %v59 = vld [vmem:[#allocation5] sm:$0xff]
    %v60 = vld [vmem:[#allocation5 + $0x8] sm:$0xff]
    %v61 = vsub.f32 %v57, %v59
    %v62 = vsub.f32 %v58, %v60
    %v63 = vand.u32 2147483647, %v61
    %v64 = vand.u32 2147483647, %v62
    %v65 = vadd.f32 %v63, %v64
    %v66 = vrot.slane %v65, 4
    %v67 = vadd.f32 %v65, %v66
    %v68 = vrot.slane %v67, 2
    %v69 = vadd.f32 %v67, %v68
    %v70 = vrot.slane %v69, 1
    %v71 = vadd.f32 %v69, %v70
    %v72 = vld [vmem:[#allocation7] sm:$0x1]
    %v73 = vadd.f32 %v72, %v71
    %74 = vst [vmem:[#allocation7] sm:$0x1] %v73
    // Predicated region
    $region22: #{tpu_custom_call.1} parent=1 // pred_check
      _
    $region23: #{tpu_custom_call.1} parent=1 // pred_check_branch
      %76 = sbr.rel (0) target = $region25
    $region24: #{tpu_custom_call.1} parent=1 // pred_region
      %s78 = ssub.s32 16, 16
      %79 = vsyncadd [#allocation4], %s78
      %s81 = sshll.u32 [#allocation7], 4
      %s82 = int_to_ptr.vmem [resolvable:$true] %s81
      %84 = dma.vmem_to_hbm [thread:$0]  %s82, 16, %s2, [#allocation4]
    $region25: #{tpu_custom_call.1} parent=1 // pred_fallthru
      _
    // Predicated region
    $region26: #{tpu_custom_call.1} parent=1 // pred_check
      _
    $region27: #{tpu_custom_call.1} parent=1 // pred_check_branch
      %86 = sbr.rel (0) target = $region29
    $region28: #{tpu_custom_call.1} parent=1 // pred_region
      %87 = dma.done [#allocation4], 16
    $region29: #{tpu_custom_call.1} parent=1 // pred_fallthru
      _
    %88 = vsyncpa [#allocation3], 1
    %89 = vsyncpa [#allocation6], 1
    %90 = vsyncpa [#allocation4], 1

</llo_original>
